<compile_context>
chip_gen: v5e
topology: v5e:2x2
jax: 0.10.0
libtpu: 0.0.40
codegen_flags: <defaults>
</compile_context>

<pallas_src>
import functools

import jax
import jax.numpy as jnp
from jax.experimental import pallas as pl
from jax.experimental.pallas import tpu as pltpu


def _round_up(x, m):
    return ((x + m - 1) // m) * m


def _focal_loss_kernel(logits_ref, targets_ref, out_ref, *, alpha, gamma, n_rows, block_rows):
    i = pl.program_id(0)

    x = logits_ref[...].astype(jnp.float32)      # (TM, C) f32 compute (v5e VPU/EUP need f32)
    t = targets_ref[...]                         # (TM, 1) int32

    # Numerically stable softmax pieces along the class (lane) axis.
    m = jnp.max(x, axis=-1, keepdims=True)       # (TM, 1)
    e = jnp.exp(x - m)                           # (TM, C) -- the only unavoidable EUP op
    sum_e = jnp.sum(e, axis=-1, keepdims=True)   # (TM, 1)

    # One-hot gather of the target column (no dynamic lane gather on TPU).
    cls = jax.lax.broadcasted_iota(jnp.int32, x.shape, 1)        # (TM, C)
    onehot = (cls == t).astype(jnp.float32)
    x_t = jnp.sum(onehot * x, axis=-1, keepdims=True)            # logits[row, target]
    e_t = jnp.sum(onehot * e, axis=-1, keepdims=True)            # exp(z)[row, target]

    # ce = logsumexp(x) - x_target   (no logp materialization)
    ce = (m + jnp.log(sum_e)) - x_t                              # (TM, 1)

    # pt = softmax(x)[target]; (1 - pt) taken exactly from the softmax pieces
    # (avoids exp(-ce) and the 1 - exp(-ce) cancellation when pt ~ 1).
    inv_sum = 1.0 / sum_e
    one_minus_pt = (sum_e - e_t) * inv_sum                       # (TM, 1)

    # Static gamma specialization: avoid jnp.power's exp(gamma*log(.)) lowering.
    if gamma == 0.0:
        w = jnp.ones_like(one_minus_pt)
    elif gamma == float(int(gamma)) and gamma > 0:
        w = one_minus_pt
        for _ in range(int(gamma) - 1):
            w = w * one_minus_pt
    else:
        w = one_minus_pt ** gamma

    focal = alpha * w * ce                                       # (TM, 1)

    # Mask rows past the true batch size (last block may be padded with garbage).
    row = i * block_rows + jax.lax.broadcasted_iota(jnp.int32, focal.shape, 0)
    out_ref[...] = jnp.where(row < n_rows, focal, 0.0)


def focal_loss(logits, targets, alpha=1.0, gamma=2.0, reduction="mean", block_rows=512):
    """logits: (N, C) float (f32 or bf16); targets: (N,) integer class indices.

    Returns scalar f32 for reduction in {'mean', 'sum'}, per-sample (N,) f32 for 'none'.
    """
    n, c = logits.shape
    targets_2d = targets.astype(jnp.int32).reshape(n, 1)

    # TM = 512 is the HBM-roofline sweet spot; clamp so the double-buffered logits
    # tiles stay within ~32 MiB of VMEM (fits the 48 MiB scoped limit requested below
    # on all of v5e / v6e / v7x; v7x physical VMEM is only 64 MiB).
    bytes_per = jnp.dtype(logits.dtype).itemsize
    per_row_bytes = c * bytes_per + 4                       # logits row + int32 target
    tm_cap = max(8, ((32 * 1024 * 1024) // (2 * per_row_bytes)) // 8 * 8)
    tm = max(8, min(block_rows, _round_up(n, 8), tm_cap))
    grid_m = pl.cdiv(n, tm)

    # TODO(synk): when C < 128 (as in the demo), lane utilization of every (TM, C) vreg
    # is C/128; a lane-packing restructure would be needed to recover that 4x for C=32.
    kernel = functools.partial(
        _focal_loss_kernel,
        alpha=float(alpha), gamma=float(gamma), n_rows=n, block_rows=tm,
    )

    per_row = pl.pallas_call(
        kernel,
        out_shape=jax.ShapeDtypeStruct((n, 1), jnp.float32),
        grid=(grid_m,),
        in_specs=[
            pl.BlockSpec((tm, c), lambda i: (i, 0)),
            pl.BlockSpec((tm, 1), lambda i: (i, 0)),
        ],
        out_specs=pl.BlockSpec((tm, 1), lambda i: (i, 0)),
        compiler_params=pltpu.CompilerParams(
            dimension_semantics=("parallel",),      # batch blocks are independent
            vmem_limit_bytes=48 * 1024 * 1024,
        ),
    )(logits, targets_2d)

    if reduction == "mean":
        return jnp.sum(per_row) / jnp.float32(n)
    elif reduction == "sum":
        return jnp.sum(per_row)
    else:  # 'none'
        return per_row[:, 0]


def _focal_loss_ref(logits, targets, alpha=1.0, gamma=2.0):
    logp = jax.nn.log_softmax(logits.astype(jnp.float32), axis=-1)
    ce = -jnp.take_along_axis(logp, targets[:, None].astype(jnp.int32), axis=-1)[:, 0]
    pt = jnp.exp(-ce)
    return jnp.mean(alpha * (1.0 - pt) ** gamma * ce)


if __name__ == "__main__":
    key = jax.random.PRNGKey(0)
    k1, k2 = jax.random.split(key)

    N, C = 8, 32  # small synthetic shapes: batch=8, num_classes=32
    logits = jax.random.normal(k1, (N, C), dtype=jnp.float32)
    targets = jax.random.randint(k2, (N,), 0, C, dtype=jnp.int32)

    out = focal_loss(logits, targets, alpha=1.0, gamma=2.0)
    out = jax.block_until_ready(out)

    ref = _focal_loss_ref(logits, targets, alpha=1.0, gamma=2.0)
    assert jnp.allclose(out, ref, rtol=1e-4, atol=1e-6), (out, ref)

    print("KERNEL_OK")
</pallas_src>

<mosaic_0001>
module attributes {stable_mosaic.version = 11 : i64} {
  func.func @_focal_loss_kernel(%arg0: i32, %arg1: memref<8x32xf32, #tpu.memory_space<vmem>>, %arg2: memref<8x1xi32, #tpu.memory_space<vmem>>, %arg3: memref<8x1xf32, #tpu.memory_space<vmem>>) attributes {dimension_semantics = [#tpu.dimension_semantics<parallel>], iteration_bounds = array<i64: 1>, scalar_prefetch = 0 : i64, scratch_operands = 0 : i64, tpu.core_type = #tpu.core_type<tc>, window_params = [{transform_indices = @transform_0, window_bounds = array<i64: 8, 32>}, {transform_indices = @transform_1, window_bounds = array<i64: 8, 1>}, {transform_indices = @transform_2, window_bounds = array<i64: 8, 1>}]} {
    %c0 = arith.constant 0 : index
    %c0_0 = arith.constant 0 : index
    %0 = vector.load %arg1[%c0, %c0_0] : memref<8x32xf32, #tpu.memory_space<vmem>>, vector<8x32xf32>
    %c0_1 = arith.constant 0 : index
    %c0_2 = arith.constant 0 : index
    %1 = vector.load %arg2[%c0_1, %c0_2] : memref<8x1xi32, #tpu.memory_space<vmem>>, vector<8x1xi32>
    %cst = arith.constant dense<0xFF800000> : vector<8xf32>
    %2 = vector.multi_reduction <maximumf>, %0, %cst [1] : vector<8x32xf32> to vector<8xf32>
    %3 = vector.shape_cast %2 : vector<8xf32> to vector<8x1xf32>
    %4 = vector.broadcast %3 : vector<8x1xf32> to vector<8x32xf32>
    %5 = arith.subf %0, %4 : vector<8x32xf32>
    %6 = math.exp %5 : vector<8x32xf32>
    %cst_3 = arith.constant dense<0.000000e+00> : vector<8xf32>
    %7 = vector.multi_reduction <add>, %6, %cst_3 [1] : vector<8x32xf32> to vector<8xf32>
    %8 = vector.shape_cast %7 : vector<8xf32> to vector<8x1xf32>
    %9 = tpu.iota {dimensions = array<i32: 1>} : vector<8x32xi32>
    %10 = vector.broadcast %1 : vector<8x1xi32> to vector<8x32xi32>
    %11 = arith.cmpi eq, %9, %10 : vector<8x32xi32>
    %12 = arith.extui %11 : vector<8x32xi1> to vector<8x32xi32>
    %13 = arith.sitofp %12 : vector<8x32xi32> to vector<8x32xf32>
    %14 = arith.mulf %13, %0 : vector<8x32xf32>
    %cst_4 = arith.constant dense<0.000000e+00> : vector<8xf32>
    %15 = vector.multi_reduction <add>, %14, %cst_4 [1] : vector<8x32xf32> to vector<8xf32>
    %16 = vector.shape_cast %15 : vector<8xf32> to vector<8x1xf32>
    %17 = arith.mulf %13, %6 : vector<8x32xf32>
    %cst_5 = arith.constant dense<0.000000e+00> : vector<8xf32>
    %18 = vector.multi_reduction <add>, %17, %cst_5 [1] : vector<8x32xf32> to vector<8xf32>
    %19 = vector.shape_cast %18 : vector<8xf32> to vector<8x1xf32>
    %20 = math.log %8 : vector<8x1xf32>
    %21 = arith.addf %3, %20 : vector<8x1xf32>
    %22 = arith.subf %21, %16 : vector<8x1xf32>
    %cst_6 = arith.constant 1.000000e+00 : f32
    %23 = vector.broadcast %cst_6 : f32 to vector<8x1xf32>
    %24 = arith.divf %23, %8 : vector<8x1xf32>
    %25 = arith.subf %8, %19 : vector<8x1xf32>
    %26 = arith.mulf %25, %24 : vector<8x1xf32>
    %27 = arith.mulf %26, %26 : vector<8x1xf32>
    %cst_7 = arith.constant 1.000000e+00 : f32
    %28 = vector.broadcast %cst_7 : f32 to vector<8x1xf32>
    %29 = arith.mulf %28, %27 : vector<8x1xf32>
    %30 = arith.mulf %29, %22 : vector<8x1xf32>
    %c8_i32 = arith.constant 8 : i32
    %31 = arith.muli %arg0, %c8_i32 : i32
    %32 = tpu.iota {dimensions = array<i32: 0>} : vector<8x1xi32>
    %33 = vector.broadcast %31 : i32 to vector<8x1xi32>
    %34 = arith.addi %33, %32 : vector<8x1xi32>
    %c8_i32_8 = arith.constant 8 : i32
    %35 = vector.broadcast %c8_i32_8 : i32 to vector<8x1xi32>
    %36 = arith.cmpi slt, %34, %35 : vector<8x1xi32>
    %cst_9 = arith.constant 0.000000e+00 : f32
    %37 = vector.broadcast %cst_9 : f32 to vector<8x1xf32>
    %38 = arith.select %36, %30, %37 : vector<8x1xi1>, vector<8x1xf32>
    %c0_10 = arith.constant 0 : index
    %c0_11 = arith.constant 0 : index
    %39 = vector.load %arg3[%c0_10, %c0_11] : memref<8x1xf32, #tpu.memory_space<vmem>>, vector<8x1xf32>
    tpu.vector_store %arg3[%c0_10, %c0_11], %38 {strides = array<i32>} : memref<8x1xf32, #tpu.memory_space<vmem>>, vector<8x1xf32>,
    return
  }
  func.func @transform_0(%arg0: i32) -> (i32, i32) {
    %c0_i32 = arith.constant 0 : i32
    %c0_i32_0 = arith.constant 0 : i32
    return %arg0, %c0_i32 : i32, i32
  }
  func.func @transform_1(%arg0: i32) -> (i32, i32) {
    %c0_i32 = arith.constant 0 : i32
    %c0_i32_0 = arith.constant 0 : i32
    return %arg0, %c0_i32 : i32, i32
  }
  func.func @transform_2(%arg0: i32) -> (i32, i32) {
    %c0_i32 = arith.constant 0 : i32
    %c0_i32_0 = arith.constant 0 : i32
    return %arg0, %c0_i32 : i32, i32
  }
}

</mosaic_0001>

<llo_original>
// kernel: tpu_custom_call.1
$region0: #{tpu_custom_call.1}
  #allocation0 [shape = 'u32[]', space=smem, size = 0x4, offset = 0x4, fixed_abs, tag = 'smem constant byte address 0x4 - core index']
  #allocation1 [shape = 'u32[72,128]{1,0:T(1,128)}', space=vmem, size = 0x9000, scoped, tag = 'internal scratch']
  %s0 = inlined_call_operand.vmem [shape: f32[8,32], index: 0, kind: input, shape index: {}]
  %s1 = inlined_call_operand.vmem [shape: s32[8,1], index: 1, kind: input, shape index: {}]
  %s2 = inlined_call_operand.vmem [shape: f32[8,1], index: 2, kind: output, shape index: {}]
  %s3 = sld [smem:[#allocation0]]
  $region18: #{tpu_custom_call.1} parent=0
    _
  %s5 = ssub.s32 1, %s3
  %s6 = scalar_select 0, %s5, %s3
  // Predicated region
  $region2: #{tpu_custom_call.1} parent=0 // pred_check
    _
  $region3: #{tpu_custom_call.1} parent=0 // pred_check_branch
    %8 = sbr.rel (0) target = $region5
  $region4: #{tpu_custom_call.1} parent=0 // pred_region
    _
  $region5: #{tpu_custom_call.1} parent=0 // pred_fallthru
    _
  // Predicated region
  $region6: #{tpu_custom_call.1} parent=0 // pred_check
    _
  $region7: #{tpu_custom_call.1} parent=0 // pred_check_branch
    %10 = sbr.rel (0) target = $region9
  $region8: #{tpu_custom_call.1} parent=0 // pred_region
    _
  $region9: #{tpu_custom_call.1} parent=0 // pred_fallthru
    _
  %v11 = vld [vmem:[%s0] sm:$0xff]
  %v12 = vld [vmem:[%s1] sm:$0xff]
  %vm13 = vcmask 261120
  %v14 = vsel %vm13, %v11, -inf
  %15 = vmax.xlane.f32.xlu0 %v14
  %v16 = vpop.xlane.xlu0 %15
  %v17 = vsub.f32 %v11, %v16
  %v18 = vmul.f32 %v17, 1.442695
  %v19 = vpow.pop %v18
  %v20 = vsel %vm13, %v19, 0.0
  %21 = vadd.xlane.f32.xlu0 %v20
  %v22 = vpop.xlane.xlu0 %21
  %v23 = vlaneseq
  %v24 = vand.u32 %v23, 127
  %25 = vset.pattern.permute.xlu0 0
  %26 = vperm.xlu0 %25, %v12
  %v27 = vpop.permute.xlu0 %26
  %vm28 = vcmp.eq.s32.totalorder %v24, %v27
  %v29 = vsel %vm28, 1, 0
  %v30 = vcvt.s32.f32 %v29
  %v31 = vmul.f32 %v30, %v11
  %v32 = vsel %vm13, %v31, 0.0
  %33 = vadd.xlane.f32.xlu0 %v32
  %v34 = vpop.xlane.xlu0 %33
  %v35 = vmul.f32 %v30, %v19
  %v36 = vsel %vm13, %v35, 0.0
  %37 = vadd.xlane.f32.xlu0 %v36
  %v38 = vpop.xlane.xlu0 %37
  %v39 = vlog2.pop %v22
  %v40 = vmul.f32 %v39, 0.6931472
  %v41 = vadd.f32 %v16, %v40
  %v42 = vsub.f32 %v41, %v34
  %v43 = vrcp.pop %v22
  %v44 = vmul.f32 %v22, %v43
  %v45 = vsub.f32 1.0, %v44
  %v46 = vmul.f32 %v43, %v45
  %v47 = vadd.f32 %v43, %v46
  %vm48 = vweird.f32 %v22
  %vm49 = vweird.f32 %v43
  %vm50 = vmor %vm48, %vm49
  %v51 = vsel %vm50, %v43, %v47
  %v52 = vand.u32 2147483647, %v22
  %vm53 = vcmp.eq.f32.partialorder %v52, 8.507059e+37
  %v54 = vand.u32 %v22, 2147483648
  %v55 = vor.u32 1.1754944e-38, %v54
  %v56 = vsel %vm53, %v55, %v51
  %v57 = vmul.f32 1.0, %v56
  %v58 = vsub.f32 %v22, %v38
  %v59 = vmul.f32 %v58, %v57
  %v60 = vmul.f32 %v59, %v59
  %v61 = vmul.f32 %v60, %v42
  %s62 = smul.u32 0, 8
  %v63 = vlaneseq
  %v64 = vshrl.u32 %v63, 7
  %v65 = vstv %s62
  %v66 = vadd.s32 %v65, %v64
  %vm67 = vcmp.lt.s32.totalorder %v66, 8
  %v68 = vsel %vm67, %v61, 0.0
  %vm69 = vcmask 7168
  %70 = vst.msk [vmem:[%s2] sm:$0xff] %vm69, %v68
  // Predicated region
  $region10: #{tpu_custom_call.1} parent=0 // pred_check
    _
  $region11: #{tpu_custom_call.1} parent=0 // pred_check_branch
    %72 = sbr.rel (0) target = $region13
  $region12: #{tpu_custom_call.1} parent=0 // pred_region
    _
  $region13: #{tpu_custom_call.1} parent=0 // pred_fallthru
    _
  // Predicated region
  $region14: #{tpu_custom_call.1} parent=0 // pred_check
    _
  $region15: #{tpu_custom_call.1} parent=0 // pred_check_branch
    %74 = sbr.rel (0) target = $region17
  $region16: #{tpu_custom_call.1} parent=0 // pred_region
    _
  $region17: #{tpu_custom_call.1} parent=0 // pred_fallthru
    _

</llo_original>
